<compile_context>
chip_gen: v6e
topology: v6e:2x2x1
jax: 0.10.0
libtpu: 0.0.40
codegen_flags: <defaults>
</compile_context>

<pallas_src>
import functools

import jax
import jax.numpy as jnp
from jax import lax
from jax.experimental import pallas as pl
from jax.experimental.pallas import tpu as pltpu


# ---------------------------------------------------------------------------
# Fused kernel: one batch BLOCK (b_blk elements) per grid step.
# ---------------------------------------------------------------------------
def _fused_attention_kernel(x_ref, w_qkv_ref, w_out_ref, b_out_ref, o_ref,
                            qkv_ref, *, b_blk, seq_len, heads, dim_head,
                            scale, compute_dtype):
    """Shapes seen by the kernel:
         x_ref:     (b_blk*seq_len, dim)      compute_dtype  (row-flattened)
         w_qkv_ref: (dim, 3*inner)            compute_dtype  (pre-transposed)
         w_out_ref: (inner, dim)              compute_dtype  (pre-transposed)
         b_out_ref: (1, dim)                  float32
         o_ref:     (b_blk*seq_len, dim)      output dtype
         qkv_ref:   (b_blk*seq_len, 3*inner)  compute_dtype  VMEM scratch
    """
    _, dim = x_ref.shape
    inner = heads * dim_head

    # ---- Fused QKV projection over the whole batch block (row-wise) --------
    qkv_f32 = jnp.dot(x_ref[...], w_qkv_ref[...],
                      preferred_element_type=jnp.float32)
    # Fold the softmax scale into the Q third ONCE and downcast ONCE; a single
    # lane-dense store of the (rows, 3*inner) slab, then the f32 buffer dies.
    col = lax.broadcasted_iota(jnp.int32, (1, 3 * inner), 1)
    q_scale = jnp.where(col < inner, jnp.float32(scale), jnp.float32(1.0))
    qkv_ref[...] = (qkv_f32 * q_scale).astype(compute_dtype)

    w_out = w_out_ref[...]          # (inner, dim), stays resident in vregs
    bias = b_out_ref[...]           # (1, dim), f32, broadcasts over rows

    # ---- Attention: fori_loop over batch elements of the block -------------
    # fori_loop keeps only one batch element's N^2 intermediates live.
    def body(b, carry):
        r0 = pl.multiple_of(b * seq_len, seq_len)   # seq_len is a multiple of 8
        acc = jnp.zeros((seq_len, dim), jnp.float32)
        # Static head unroll: static lane slices of qkv_ref are free views.
        for h in range(heads):
            lo = h * dim_head
            q_h = qkv_ref[pl.ds(r0, seq_len), lo:lo + dim_head]
            k_h = qkv_ref[pl.ds(r0, seq_len), inner + lo:inner + lo + dim_head]
            v_h = qkv_ref[pl.ds(r0, seq_len),
                          2 * inner + lo:2 * inner + lo + dim_head]

            # q @ k^T without an explicit transpose (scale already in q).
            dots = lax.dot_general(q_h, k_h, (((1,), (1,)), ((), ())),
                                   preferred_element_type=jnp.float32)

            # Softmax in f32; normalize AFTER P@V (N*Dh muls instead of N*N),
            # reciprocal goes to the EUP slot.
            m = jnp.max(dots, axis=-1, keepdims=True)
            p = jnp.exp(dots - m)
            l = jnp.sum(p, axis=-1, keepdims=True)
            pv = jnp.dot(p.astype(compute_dtype), v_h,
                         preferred_element_type=jnp.float32)        # (N, Dh)
            o_h = pv * pl.reciprocal(l, approx=True)

            # Fused head-merge + output projection:
            #   out += (attn_h @ v_h) @ Wout^T[lo:hi, :]
            acc = acc + jnp.dot(o_h.astype(compute_dtype),
                                w_out[lo:lo + dim_head, :],
                                preferred_element_type=jnp.float32)

        o_ref[pl.ds(r0, seq_len), :] = (acc + bias).astype(o_ref.dtype)
        return carry

    lax.fori_loop(0, b_blk, body, 0)


# ---------------------------------------------------------------------------
# Wrapper helpers
# ---------------------------------------------------------------------------
def _pick_batch_block(batch, seq_len, target_rows=512):
    """Largest divisor of `batch` whose block stays <= target_rows rows while
    keeping >= 2 grid steps (so both v7x TensorCores get work)."""
    best = 1
    for d in range(1, batch + 1):
        if batch % d:
            continue
        if d * seq_len > target_rows:
            continue
        if batch // d < 2 and batch >= 2:
            continue
        best = max(best, d)
    return best


def _vmem_limit_bytes(default=32 * 1024 * 1024):
    """Generation-aware scoped-VMEM cap: ~96 MiB on v5e/v6e (128 MiB physical),
    ~48 MiB on v7x (64 MiB physical); falls back to 32 MiB if unqueryable."""
    try:
        cap = int(pltpu.get_tpu_info().vmem_capacity_bytes)
    except Exception:
        return default
    return max(default, min(96 * 1024 * 1024, (cap * 3) // 4))


# ---------------------------------------------------------------------------
# Wrapper
# ---------------------------------------------------------------------------
def attention_forward(x, params, heads, *, compute_dtype=jnp.bfloat16):
    """x: (B, N, dim) -> (B, N, dim).  Matches Attention.forward(x, mask=None).

    compute_dtype=jnp.bfloat16 (default) uses bf16 MXU operands with f32
    accumulation on all generations; softmax / accumulators stay f32.
    """
    B, N, dim = x.shape
    w_qkv = jnp.asarray(params["w_qkv"])   # (3*inner, dim) — PyTorch Linear layout
    w_out = jnp.asarray(params["w_out"])   # (dim, inner)
    b_out = jnp.asarray(params["b_out"])   # (dim,)
    inner = w_qkv.shape[0] // 3
    dim_head = inner // heads
    scale = float(dim) ** (-0.5)           # NOTE: dim, not dim_head (matches module)

    assert N % 8 == 0, "seq_len must be a multiple of 8 (sublane alignment)"

    b_blk = _pick_batch_block(B, N)
    rows_blk = b_blk * N

    # Row-flatten: projections are row-wise, so one grid step runs a single
    # wide MXU matmul over b_blk*N rows (B and N merged).  Reshape is free.
    x_flat = x.reshape(B * N, dim).astype(compute_dtype)
    w_qkv_t = w_qkv.T.astype(compute_dtype)          # (dim, 3*inner)
    w_out_t = w_out.T.astype(compute_dtype)          # (inner, dim)
    b_2d = b_out.reshape(1, dim).astype(jnp.float32)

    kernel = functools.partial(
        _fused_attention_kernel,
        b_blk=b_blk, seq_len=N, heads=heads, dim_head=dim_head,
        scale=scale, compute_dtype=compute_dtype)

    out_flat = pl.pallas_call(
        kernel,
        out_shape=jax.ShapeDtypeStruct((B * N, dim), x.dtype),
        grid_spec=pltpu.PrefetchScalarGridSpec(
            num_scalar_prefetch=0,
            grid=(B // b_blk,),
            in_specs=[
                # Per-step activation block (b_blk*N rows).
                pl.BlockSpec((rows_blk, dim), lambda i: (i, 0)),
                # Weights / bias: constant index_map -> fetched once, resident.
                pl.BlockSpec((dim, 3 * inner), lambda i: (0, 0)),
                pl.BlockSpec((inner, dim), lambda i: (0, 0)),
                pl.BlockSpec((1, dim), lambda i: (0, 0)),
            ],
            out_specs=pl.BlockSpec((rows_blk, dim), lambda i: (i, 0)),
            scratch_shapes=[pltpu.VMEM((rows_blk, 3 * inner), compute_dtype)],
        ),
        compiler_params=pltpu.CompilerParams(
            # Batch-block axis shards across v7x's two TensorCores.
            dimension_semantics=("parallel",),
            vmem_limit_bytes=_vmem_limit_bytes(),
        ),
    )(x_flat, w_qkv_t, w_out_t, b_2d)

    return out_flat.reshape(B, N, dim)


# ---------------------------------------------------------------------------
# Reference (pure JAX) for sanity checking
# ---------------------------------------------------------------------------
def attention_reference(x, params, heads):
    B, N, dim = x.shape
    w_qkv, w_out, b_out = params["w_qkv"], params["w_out"], params["b_out"]
    inner = w_qkv.shape[0] // 3
    dim_head = inner // heads
    scale = float(dim) ** (-0.5)
    qkv = x @ w_qkv.T
    q, k, v = jnp.split(qkv, 3, axis=-1)
    rh = lambda t: t.reshape(B, N, heads, dim_head).transpose(0, 2, 1, 3)
    q, k, v = rh(q), rh(k), rh(v)
    dots = jnp.einsum("bhid,bhjd->bhij", q, k) * scale
    attn = jax.nn.softmax(dots, axis=-1)
    out = jnp.einsum("bhij,bhjd->bhid", attn, v)
    out = out.transpose(0, 2, 1, 3).reshape(B, N, inner)
    return out @ w_out.T + b_out


# ---------------------------------------------------------------------------
if __name__ == "__main__":
    # Small, module-consistent shapes.
    B, N, dim = 2, 8, 32
    heads, dim_head = 4, 16
    inner = heads * dim_head

    key = jax.random.PRNGKey(0)
    kx, kqkv, kwo, kbo = jax.random.split(key, 4)

    x = jax.random.normal(kx, (B, N, dim), dtype=jnp.float32)
    params = {
        # nn.Linear(dim, inner*3, bias=False).weight -> (inner*3, dim)
        "w_qkv": jax.random.normal(kqkv, (3 * inner, dim), jnp.float32) * 0.05,
        # nn.Linear(inner, dim).weight -> (dim, inner), bias -> (dim,)
        "w_out": jax.random.normal(kwo, (dim, inner), jnp.float32) * 0.05,
        "b_out": jax.random.normal(kbo, (dim,), jnp.float32) * 0.05,
    }

    ref = attention_reference(x, params, heads)

    # bf16 MXU operands with f32 accumulation (default, all generations).
    out_bf16 = jax.block_until_ready(attention_forward(x, params, heads))
    assert out_bf16.shape == (B, N, dim)
    assert jnp.allclose(out_bf16, ref, atol=2e-2, rtol=2e-2), "bf16 mismatch vs reference"

    # f32 MXU operands (tighter parity check).
    out_f32 = jax.block_until_ready(
        attention_forward(x, params, heads, compute_dtype=jnp.float32))
    assert out_f32.shape == (B, N, dim)
    assert jnp.allclose(out_f32, ref, atol=1e-3, rtol=1e-3), "f32 mismatch vs reference"

    print("KERNEL_OK")
</pallas_src>

<mosaic_0001>
module attributes {stable_mosaic.version = 11 : i64} {
  func.func @_fused_attention_kernel(%arg0: i32, %arg1: memref<8x32xbf16, #tpu.memory_space<vmem>>, %arg2: memref<32x192xbf16, #tpu.memory_space<vmem>>, %arg3: memref<64x32xbf16, #tpu.memory_space<vmem>>, %arg4: memref<1x32xf32, #tpu.memory_space<vmem>>, %arg5: memref<8x32xf32, #tpu.memory_space<vmem>>, %arg6: memref<8x192xbf16, #tpu.memory_space<vmem>>) attributes {dimension_semantics = [#tpu.dimension_semantics<parallel>], iteration_bounds = array<i64: 2>, scalar_prefetch = 0 : i64, scratch_operands = 1 : i64, tpu.core_type = #tpu.core_type<tc>, window_params = [{transform_indices = @transform_0, window_bounds = array<i64: 8, 32>}, {pipeline_mode = #tpu.pipeline_mode<synchronous>, transform_indices = @transform_1, window_bounds = array<i64: 32, 192>}, {pipeline_mode = #tpu.pipeline_mode<synchronous>, transform_indices = @transform_2, window_bounds = array<i64: 64, 32>}, {pipeline_mode = #tpu.pipeline_mode<synchronous>, transform_indices = @transform_3, window_bounds = array<i64: 1, 32>}, {transform_indices = @transform_4, window_bounds = array<i64: 8, 32>}]} {
    %c0 = arith.constant 0 : index
    %c0_0 = arith.constant 0 : index
    %0 = vector.load %arg1[%c0, %c0_0] : memref<8x32xbf16, #tpu.memory_space<vmem>>, vector<8x32xbf16>
    %c0_1 = arith.constant 0 : index
    %c0_2 = arith.constant 0 : index
    %1 = vector.load %arg2[%c0_1, %c0_2] : memref<32x192xbf16, #tpu.memory_space<vmem>>, vector<32x192xbf16>
    %cst = arith.constant dense<0.000000e+00> : vector<8x192xf32>
    %2 = tpu.matmul %0, %1, %cst {dimension_numbers = #tpu.dot_dimension_numbers<[1], [0], [0], [1], [0, 0, 1, 1], [], []>} : vector<8x32xbf16>, vector<32x192xbf16>, vector<8x192xf32> -> vector<8x192xf32>
    %3 = tpu.iota {dimensions = array<i32: 1>} : vector<1x192xi32>
    %c64_i32 = arith.constant 64 : i32
    %4 = vector.broadcast %c64_i32 : i32 to vector<1x192xi32>
    %5 = arith.cmpi slt, %3, %4 : vector<1x192xi32>
    %cst_3 = arith.constant 0.176776692 : f32
    %cst_4 = arith.constant 1.000000e+00 : f32
    %6 = vector.broadcast %cst_3 : f32 to vector<1x192xf32>
    %7 = vector.broadcast %cst_4 : f32 to vector<1x192xf32>
    %8 = arith.select %5, %6, %7 : vector<1x192xi1>, vector<1x192xf32>
    %9 = vector.broadcast %8 : vector<1x192xf32> to vector<8x192xf32>
    %10 = arith.mulf %2, %9 : vector<8x192xf32>
    %11 = arith.truncf %10 : vector<8x192xf32> to vector<8x192xbf16>
    %c0_5 = arith.constant 0 : index
    %c0_6 = arith.constant 0 : index
    %12 = vector.load %arg6[%c0_5, %c0_6] : memref<8x192xbf16, #tpu.memory_space<vmem>>, vector<8x192xbf16>
    tpu.vector_store %arg6[%c0_5, %c0_6], %11 {strides = array<i32>} : memref<8x192xbf16, #tpu.memory_space<vmem>>, vector<8x192xbf16>,
    %c0_7 = arith.constant 0 : index
    %c0_8 = arith.constant 0 : index
    %13 = vector.load %arg3[%c0_7, %c0_8] : memref<64x32xbf16, #tpu.memory_space<vmem>>, vector<64x32xbf16>
    %c0_9 = arith.constant 0 : index
    %c0_10 = arith.constant 0 : index
    %14 = vector.load %arg4[%c0_9, %c0_10] : memref<1x32xf32, #tpu.memory_space<vmem>>, vector<1x32xf32>
    %c0_i32 = arith.constant 0 : i32
    %c8_i32 = arith.constant 8 : i32
    %15 = arith.muli %c0_i32, %c8_i32 : i32
    %16 = tpu.assume_multiple %15, 8 : i32
    %cst_11 = arith.constant 0.000000e+00 : f32
    %17 = vector.broadcast %cst_11 : f32 to vector<8x32xf32>
    %18 = arith.index_cast %16 : i32 to index
    %c0_12 = arith.constant 0 : index
    %19 = vector.load %arg6[%18, %c0_12] : memref<8x192xbf16, #tpu.memory_space<vmem>>, vector<8x16xbf16>
    %20 = arith.index_cast %16 : i32 to index
    %c64 = arith.constant 64 : index
    %21 = vector.load %arg6[%20, %c64] : memref<8x192xbf16, #tpu.memory_space<vmem>>, vector<8x16xbf16>
    %22 = arith.index_cast %16 : i32 to index
    %c128 = arith.constant 128 : index
    %23 = vector.load %arg6[%22, %c128] : memref<8x192xbf16, #tpu.memory_space<vmem>>, vector<8x16xbf16>
    %cst_13 = arith.constant dense<0.000000e+00> : vector<8x8xf32>
    %24 = tpu.matmul %19, %21, %cst_13 {dimension_numbers = #tpu.dot_dimension_numbers<[1], [1], [0], [0], [0, 0, 1, 0], [], []>} : vector<8x16xbf16>, vector<8x16xbf16>, vector<8x8xf32> -> vector<8x8xf32>
    %cst_14 = arith.constant dense<0xFF800000> : vector<8xf32>
    %25 = vector.multi_reduction <maximumf>, %24, %cst_14 [1] : vector<8x8xf32> to vector<8xf32>
    %26 = vector.shape_cast %25 : vector<8xf32> to vector<8x1xf32>
    %27 = vector.broadcast %26 : vector<8x1xf32> to vector<8x8xf32>
    %28 = arith.subf %24, %27 : vector<8x8xf32>
    %29 = math.exp %28 : vector<8x8xf32>
    %cst_15 = arith.constant dense<0.000000e+00> : vector<8xf32>
    %30 = vector.multi_reduction <add>, %29, %cst_15 [1] : vector<8x8xf32> to vector<8xf32>
    %31 = vector.shape_cast %30 : vector<8xf32> to vector<8x1xf32>
    %32 = arith.truncf %29 : vector<8x8xf32> to vector<8x8xbf16>
    %cst_16 = arith.constant dense<0.000000e+00> : vector<8x16xf32>
    %33 = tpu.matmul %32, %23, %cst_16 {dimension_numbers = #tpu.dot_dimension_numbers<[1], [0], [0], [1], [0, 0, 1, 1], [], []>} : vector<8x8xbf16>, vector<8x16xbf16>, vector<8x16xf32> -> vector<8x16xf32>
    %34 = tpu.reciprocal %31 {approx = true} : vector<8x1xf32> -> vector<8x1xf32>
    %35 = vector.broadcast %34 : vector<8x1xf32> to vector<8x16xf32>
    %36 = arith.mulf %33, %35 : vector<8x16xf32>
    %37 = arith.truncf %36 : vector<8x16xf32> to vector<8x16xbf16>
    %38 = vector.extract_strided_slice %13 {offsets = [0, 0], sizes = [16, 32], strides = [1, 1]} : vector<64x32xbf16> to vector<16x32xbf16>
    %cst_17 = arith.constant dense<0.000000e+00> : vector<8x32xf32>
    %39 = tpu.matmul %37, %38, %cst_17 {dimension_numbers = #tpu.dot_dimension_numbers<[1], [0], [0], [1], [0, 0, 1, 1], [], []>} : vector<8x16xbf16>, vector<16x32xbf16>, vector<8x32xf32> -> vector<8x32xf32>
    %40 = arith.addf %17, %39 : vector<8x32xf32>
    %41 = arith.index_cast %16 : i32 to index
    %c16 = arith.constant 16 : index
    %42 = vector.load %arg6[%41, %c16] : memref<8x192xbf16, #tpu.memory_space<vmem>>, vector<8x16xbf16>
    %43 = arith.index_cast %16 : i32 to index
    %c80 = arith.constant 80 : index
    %44 = vector.load %arg6[%43, %c80] : memref<8x192xbf16, #tpu.memory_space<vmem>>, vector<8x16xbf16>
    %45 = arith.index_cast %16 : i32 to index
    %c144 = arith.constant 144 : index
    %46 = vector.load %arg6[%45, %c144] : memref<8x192xbf16, #tpu.memory_space<vmem>>, vector<8x16xbf16>
    %cst_18 = arith.constant dense<0.000000e+00> : vector<8x8xf32>
    %47 = tpu.matmul %42, %44, %cst_18 {dimension_numbers = #tpu.dot_dimension_numbers<[1], [1], [0], [0], [0, 0, 1, 0], [], []>} : vector<8x16xbf16>, vector<8x16xbf16>, vector<8x8xf32> -> vector<8x8xf32>
    %cst_19 = arith.constant dense<0xFF800000> : vector<8xf32>
    %48 = vector.multi_reduction <maximumf>, %47, %cst_19 [1] : vector<8x8xf32> to vector<8xf32>
    %49 = vector.shape_cast %48 : vector<8xf32> to vector<8x1xf32>
    %50 = vector.broadcast %49 : vector<8x1xf32> to vector<8x8xf32>
    %51 = arith.subf %47, %50 : vector<8x8xf32>
    %52 = math.exp %51 : vector<8x8xf32>
    %cst_20 = arith.constant dense<0.000000e+00> : vector<8xf32>
    %53 = vector.multi_reduction <add>, %52, %cst_20 [1] : vector<8x8xf32> to vector<8xf32>
    %54 = vector.shape_cast %53 : vector<8xf32> to vector<8x1xf32>
    %55 = arith.truncf %52 : vector<8x8xf32> to vector<8x8xbf16>
    %cst_21 = arith.constant dense<0.000000e+00> : vector<8x16xf32>
    %56 = tpu.matmul %55, %46, %cst_21 {dimension_numbers = #tpu.dot_dimension_numbers<[1], [0], [0], [1], [0, 0, 1, 1], [], []>} : vector<8x8xbf16>, vector<8x16xbf16>, vector<8x16xf32> -> vector<8x16xf32>
    %57 = tpu.reciprocal %54 {approx = true} : vector<8x1xf32> -> vector<8x1xf32>
    %58 = vector.broadcast %57 : vector<8x1xf32> to vector<8x16xf32>
    %59 = arith.mulf %56, %58 : vector<8x16xf32>
    %60 = arith.truncf %59 : vector<8x16xf32> to vector<8x16xbf16>
    %61 = vector.extract_strided_slice %13 {offsets = [16, 0], sizes = [16, 32], strides = [1, 1]} : vector<64x32xbf16> to vector<16x32xbf16>
    %cst_22 = arith.constant dense<0.000000e+00> : vector<8x32xf32>
    %62 = tpu.matmul %60, %61, %cst_22 {dimension_numbers = #tpu.dot_dimension_numbers<[1], [0], [0], [1], [0, 0, 1, 1], [], []>} : vector<8x16xbf16>, vector<16x32xbf16>, vector<8x32xf32> -> vector<8x32xf32>
    %63 = arith.addf %40, %62 : vector<8x32xf32>
    %64 = arith.index_cast %16 : i32 to index
    %c32 = arith.constant 32 : index
    %65 = vector.load %arg6[%64, %c32] : memref<8x192xbf16, #tpu.memory_space<vmem>>, vector<8x16xbf16>
    %66 = arith.index_cast %16 : i32 to index
    %c96 = arith.constant 96 : index
    %67 = vector.load %arg6[%66, %c96] : memref<8x192xbf16, #tpu.memory_space<vmem>>, vector<8x16xbf16>
    %68 = arith.index_cast %16 : i32 to index
    %c160 = arith.constant 160 : index
    %69 = vector.load %arg6[%68, %c160] : memref<8x192xbf16, #tpu.memory_space<vmem>>, vector<8x16xbf16>
    %cst_23 = arith.constant dense<0.000000e+00> : vector<8x8xf32>
    %70 = tpu.matmul %65, %67, %cst_23 {dimension_numbers = #tpu.dot_dimension_numbers<[1], [1], [0], [0], [0, 0, 1, 0], [], []>} : vector<8x16xbf16>, vector<8x16xbf16>, vector<8x8xf32> -> vector<8x8xf32>
    %cst_24 = arith.constant dense<0xFF800000> : vector<8xf32>
    %71 = vector.multi_reduction <maximumf>, %70, %cst_24 [1] : vector<8x8xf32> to vector<8xf32>
    %72 = vector.shape_cast %71 : vector<8xf32> to vector<8x1xf32>
    %73 = vector.broadcast %72 : vector<8x1xf32> to vector<8x8xf32>
    %74 = arith.subf %70, %73 : vector<8x8xf32>
    %75 = math.exp %74 : vector<8x8xf32>
    %cst_25 = arith.constant dense<0.000000e+00> : vector<8xf32>
    %76 = vector.multi_reduction <add>, %75, %cst_25 [1] : vector<8x8xf32> to vector<8xf32>
    %77 = vector.shape_cast %76 : vector<8xf32> to vector<8x1xf32>
    %78 = arith.truncf %75 : vector<8x8xf32> to vector<8x8xbf16>
    %cst_26 = arith.constant dense<0.000000e+00> : vector<8x16xf32>
    %79 = tpu.matmul %78, %69, %cst_26 {dimension_numbers = #tpu.dot_dimension_numbers<[1], [0], [0], [1], [0, 0, 1, 1], [], []>} : vector<8x8xbf16>, vector<8x16xbf16>, vector<8x16xf32> -> vector<8x16xf32>
    %80 = tpu.reciprocal %77 {approx = true} : vector<8x1xf32> -> vector<8x1xf32>
    %81 = vector.broadcast %80 : vector<8x1xf32> to vector<8x16xf32>
    %82 = arith.mulf %79, %81 : vector<8x16xf32>
    %83 = arith.truncf %82 : vector<8x16xf32> to vector<8x16xbf16>
    %84 = vector.extract_strided_slice %13 {offsets = [32, 0], sizes = [16, 32], strides = [1, 1]} : vector<64x32xbf16> to vector<16x32xbf16>
    %cst_27 = arith.constant dense<0.000000e+00> : vector<8x32xf32>
    %85 = tpu.matmul %83, %84, %cst_27 {dimension_numbers = #tpu.dot_dimension_numbers<[1], [0], [0], [1], [0, 0, 1, 1], [], []>} : vector<8x16xbf16>, vector<16x32xbf16>, vector<8x32xf32> -> vector<8x32xf32>
    %86 = arith.addf %63, %85 : vector<8x32xf32>
    %87 = arith.index_cast %16 : i32 to index
    %c48 = arith.constant 48 : index
    %88 = vector.load %arg6[%87, %c48] : memref<8x192xbf16, #tpu.memory_space<vmem>>, vector<8x16xbf16>
    %89 = arith.index_cast %16 : i32 to index
    %c112 = arith.constant 112 : index
    %90 = vector.load %arg6[%89, %c112] : memref<8x192xbf16, #tpu.memory_space<vmem>>, vector<8x16xbf16>
    %91 = arith.index_cast %16 : i32 to index
    %c176 = arith.constant 176 : index
    %92 = vector.load %arg6[%91, %c176] : memref<8x192xbf16, #tpu.memory_space<vmem>>, vector<8x16xbf16>
    %cst_28 = arith.constant dense<0.000000e+00> : vector<8x8xf32>
    %93 = tpu.matmul %88, %90, %cst_28 {dimension_numbers = #tpu.dot_dimension_numbers<[1], [1], [0], [0], [0, 0, 1, 0], [], []>} : vector<8x16xbf16>, vector<8x16xbf16>, vector<8x8xf32> -> vector<8x8xf32>
    %cst_29 = arith.constant dense<0xFF800000> : vector<8xf32>
    %94 = vector.multi_reduction <maximumf>, %93, %cst_29 [1] : vector<8x8xf32> to vector<8xf32>
    %95 = vector.shape_cast %94 : vector<8xf32> to vector<8x1xf32>
    %96 = vector.broadcast %95 : vector<8x1xf32> to vector<8x8xf32>
    %97 = arith.subf %93, %96 : vector<8x8xf32>
    %98 = math.exp %97 : vector<8x8xf32>
    %cst_30 = arith.constant dense<0.000000e+00> : vector<8xf32>
    %99 = vector.multi_reduction <add>, %98, %cst_30 [1] : vector<8x8xf32> to vector<8xf32>
    %100 = vector.shape_cast %99 : vector<8xf32> to vector<8x1xf32>
    %101 = arith.truncf %98 : vector<8x8xf32> to vector<8x8xbf16>
    %cst_31 = arith.constant dense<0.000000e+00> : vector<8x16xf32>
    %102 = tpu.matmul %101, %92, %cst_31 {dimension_numbers = #tpu.dot_dimension_numbers<[1], [0], [0], [1], [0, 0, 1, 1], [], []>} : vector<8x8xbf16>, vector<8x16xbf16>, vector<8x16xf32> -> vector<8x16xf32>
    %103 = tpu.reciprocal %100 {approx = true} : vector<8x1xf32> -> vector<8x1xf32>
    %104 = vector.broadcast %103 : vector<8x1xf32> to vector<8x16xf32>
    %105 = arith.mulf %102, %104 : vector<8x16xf32>
    %106 = arith.truncf %105 : vector<8x16xf32> to vector<8x16xbf16>
    %107 = vector.extract_strided_slice %13 {offsets = [48, 0], sizes = [16, 32], strides = [1, 1]} : vector<64x32xbf16> to vector<16x32xbf16>
    %cst_32 = arith.constant dense<0.000000e+00> : vector<8x32xf32>
    %108 = tpu.matmul %106, %107, %cst_32 {dimension_numbers = #tpu.dot_dimension_numbers<[1], [0], [0], [1], [0, 0, 1, 1], [], []>} : vector<8x16xbf16>, vector<16x32xbf16>, vector<8x32xf32> -> vector<8x32xf32>
    %109 = arith.addf %86, %108 : vector<8x32xf32>
    %110 = vector.broadcast %14 : vector<1x32xf32> to vector<8x32xf32>
    %111 = arith.addf %109, %110 : vector<8x32xf32>
    %112 = arith.index_cast %16 : i32 to index
    %c0_33 = arith.constant 0 : index
    %113 = vector.load %arg5[%112, %c0_33] : memref<8x32xf32, #tpu.memory_space<vmem>>, vector<8x32xf32>
    tpu.vector_store %arg5[%112, %c0_33], %111 {strides = array<i32>} : memref<8x32xf32, #tpu.memory_space<vmem>>, vector<8x32xf32>,
    %c1_i32 = arith.constant 1 : i32
    return
  }
  func.func @transform_0(%arg0: i32) -> (i32, i32) {
    %c0_i32 = arith.constant 0 : i32
    %c0_i32_0 = arith.constant 0 : i32
    return %arg0, %c0_i32 : i32, i32
  }
  func.func @transform_1(%arg0: i32) -> (i32, i32) {
    %c0_i32 = arith.constant 0 : i32
    %c0_i32_0 = arith.constant 0 : i32
    %c0_i32_1 = arith.constant 0 : i32
    return %c0_i32, %c0_i32_0 : i32, i32
  }
  func.func @transform_2(%arg0: i32) -> (i32, i32) {
    %c0_i32 = arith.constant 0 : i32
    %c0_i32_0 = arith.constant 0 : i32
    %c0_i32_1 = arith.constant 0 : i32
    return %c0_i32, %c0_i32_0 : i32, i32
  }
  func.func @transform_3(%arg0: i32) -> (i32, i32) {
    %c0_i32 = arith.constant 0 : i32
    %c0_i32_0 = arith.constant 0 : i32
    %c0_i32_1 = arith.constant 0 : i32
    return %c0_i32, %c0_i32_0 : i32, i32
  }
  func.func @transform_4(%arg0: i32) -> (i32, i32) {
    %c0_i32 = arith.constant 0 : i32
    %c0_i32_0 = arith.constant 0 : i32
    return %arg0, %c0_i32 : i32, i32
  }
}

</mosaic_0001>

<llo_original>
// kernel: tpu_custom_call.1
$region0: #{tpu_custom_call.1}
  #allocation0 [shape = 'u32[]', space=smem, size = 0x4, offset = 0x4, fixed_abs, tag = 'smem constant byte address 0x4 - core index']
  #allocation1 [shape = 'u32[144,128]{1,0:T(1,128)}', space=vmem, size = 0x12000, scoped, tag = 'internal scratch']
  #allocation2 [shape = 'bf16[8,192]{1,0:T(8,128)(2,1)}', space=vmem, size = 0x1000, scoped, tag = 'scratch operand']
  %s0 = inlined_call_operand.vmem [shape: bf16[16,32], index: 0, kind: input, shape index: {}]
  %s1 = inlined_call_operand.vmem [shape: bf16[32,192], index: 1, kind: input, shape index: {}]
  %s2 = inlined_call_operand.vmem [shape: bf16[64,32], index: 2, kind: input, shape index: {}]
  %s3 = inlined_call_operand.vmem [shape: f32[1,32], index: 3, kind: input, shape index: {}]
  %s4 = inlined_call_operand.hbm [shape: f32[16,32], index: 4, kind: output, shape index: {}]
  %s5 = sld [smem:[#allocation0]]
  $region49: #{tpu_custom_call.1} parent=0
    _
  %s7 = ssub.s32 1, %s5
  %s8 = scalar_select 0, %s7, %s5
  $region1: #{tpu_custom_call.1} parent=0
    #allocation3 [shape = 'u8[8192]{0}', space=vmem, size = 0x2000, scoped, tag = 'output window, operand 0']
    #allocation4 [shape = 's32[2]{0}', space=sflag, size = 0x8, scoped, tag = 'scoped memory for tpu_custom_call.1']
    %9 = vsyncpa [#allocation4], 0
    %s10 = scalar_lea.sflag [#allocation4], 1
    %11 = vsyncpa %s10, 0
    loop: start=0, step=1, limit=4
    $region2: #{tpu_custom_call.1} parent=1 // loop_pre_header
      _
    $region3: #{tpu_custom_call.1} parent=1 // loop_header
      %s13 = sphi 0, %s17
      %p14 = scmp.ge.s32.totalorder %s13, 4
      %s23 = sphi 0, %s25
      %s26 = sphi 0, %s23
      %s27 = sphi 0, %s26
      %s43 = sphi 0, %s27
      %s47 = sphi 0, %s47
      %s49 = sphi 0, %s47
      %s50 = sphi 0, %s49
      %s64 = sphi 0, %s50
      %s68 = sphi 0, %s68
      %s70 = sphi 0, %s68
      %s71 = sphi 0, %s70
      %s85 = sphi 0, %s71
      %s89 = sphi 0, %s89
      %s91 = sphi 0, %s89
      %s92 = sphi 0, %s91
      %s106 = sphi 0, %s92
      %s112 = sphi 0, %s114
      %s115 = sphi 0, %s112
      %s116 = sphi 0, %s115
      %s132 = sphi 0, %s116
    $region4: #{tpu_custom_call.1} parent=1 // loop_header_branch
      %16 = sbr.rel (%p14) target = $region8
    $region5: #{tpu_custom_call.1} parent=1 // loop_body
      %s18 = ssub.s32 %s13, 1
      %s19 = ssub.s32 %s13, 2
      %s20 = sadd.s32 %s13, 1
      %s21 = ssub.s32 %s13, %s20
      %p22 = scmp.eq.s32.totalorder %s21, 0
      %s24 = sadd.s32 %s23, 1
      %s25 = scalar_select %p22, %s23, %s24
      %p28 = pneg %p22
      %p29 = scmp.eq.s32.totalorder %s13, 1
      %p30 = por %p28, %p29
      %p31 = scmp.ne.s32.totalorder %s23, %s26
      %p32 = scmp.eq.s32.totalorder %s13, 0
      %p33 = por %p31, %p32
      %p34 = scmp.ne.s32.totalorder %s23, %s26
      %p35 = scmp.eq.s32.totalorder %s18, 1
      %p36 = por %p34, %p35
      %p37 = scmp.ne.s32.totalorder %s26, %s27
      %p38 = scmp.eq.s32.totalorder %s18, 0
      %p39 = por %p37, %p38
      %p40 = scmp.ne.s32.totalorder %s26, %s27
      %p41 = scmp.eq.s32.totalorder %s19, 1
      %p42 = por %p40, %p41
      %p44 = scmp.ne.s32.totalorder %s27, %s43
      %p45 = scmp.eq.s32.totalorder %s19, 0
      %p46 = por %p44, %p45
      %s48 = sadd.s32 %s47, 1
      %p51 = scmp.eq.s32.totalorder %s13, 1
      %p52 = scmp.ne.s32.totalorder %s47, %s49
      %p53 = scmp.eq.s32.totalorder %s13, 0
      %p54 = por %p52, %p53
      %p55 = scmp.ne.s32.totalorder %s47, %s49
      %p56 = scmp.eq.s32.totalorder %s18, 1
      %p57 = por %p55, %p56
      %p58 = scmp.ne.s32.totalorder %s49, %s50
      %p59 = scmp.eq.s32.totalorder %s18, 0
      %p60 = por %p58, %p59
      %p61 = scmp.ne.s32.totalorder %s49, %s50
      %p62 = scmp.eq.s32.totalorder %s19, 1
      %p63 = por %p61, %p62
      %p65 = scmp.ne.s32.totalorder %s50, %s64
      %p66 = scmp.eq.s32.totalorder %s19, 0
      %p67 = por %p65, %p66
      %s69 = sadd.s32 %s68, 1
      %p72 = scmp.eq.s32.totalorder %s13, 1
      %p73 = scmp.ne.s32.totalorder %s68, %s70
      %p74 = scmp.eq.s32.totalorder %s13, 0
      %p75 = por %p73, %p74
      %p76 = scmp.ne.s32.totalorder %s68, %s70
      %p77 = scmp.eq.s32.totalorder %s18, 1
      %p78 = por %p76, %p77
      %p79 = scmp.ne.s32.totalorder %s70, %s71
      %p80 = scmp.eq.s32.totalorder %s18, 0
      %p81 = por %p79, %p80
      %p82 = scmp.ne.s32.totalorder %s70, %s71
      %p83 = scmp.eq.s32.totalorder %s19, 1
      %p84 = por %p82, %p83
      %p86 = scmp.ne.s32.totalorder %s71, %s85
      %p87 = scmp.eq.s32.totalorder %s19, 0
      %p88 = por %p86, %p87
      %s90 = sadd.s32 %s89, 1
      %p93 = scmp.eq.s32.totalorder %s13, 1
      %p94 = scmp.ne.s32.totalorder %s89, %s91
      %p95 = scmp.eq.s32.totalorder %s13, 0
      %p96 = por %p94, %p95
      %p97 = scmp.ne.s32.totalorder %s89, %s91
      %p98 = scmp.eq.s32.totalorder %s18, 1
      %p99 = por %p97, %p98
      %p100 = scmp.ne.s32.totalorder %s91, %s92
      %p101 = scmp.eq.s32.totalorder %s18, 0
      %p102 = por %p100, %p101
      %p103 = scmp.ne.s32.totalorder %s91, %s92
      %p104 = scmp.eq.s32.totalorder %s19, 1
      %p105 = por %p103, %p104
      %p107 = scmp.ne.s32.totalorder %s92, %s106
      %p108 = scmp.eq.s32.totalorder %s19, 0
      %p109 = por %p107, %p108
      %s110 = ssub.s32 %s13, %s20
      %p111 = scmp.eq.s32.totalorder %s110, 0
      %s113 = sadd.s32 %s112, 1
      %s114 = scalar_select %p111, %s112, %s113
      %p117 = pneg %p111
      %p118 = scmp.eq.s32.totalorder %s13, 1
      %p119 = por %p117, %p118
      %p120 = scmp.ne.s32.totalorder %s112, %s115
      %p121 = scmp.eq.s32.totalorder %s13, 0
      %p122 = por %p120, %p121
      %p123 = scmp.ne.s32.totalorder %s112, %s115
      %p124 = scmp.eq.s32.totalorder %s18, 1
      %p125 = por %p123, %p124
      %p126 = scmp.ne.s32.totalorder %s115, %s116
      %p127 = scmp.eq.s32.totalorder %s18, 0
      %p128 = por %p126, %p127
      %p129 = scmp.ne.s32.totalorder %s115, %s116
      %p130 = scmp.eq.s32.totalorder %s19, 1
      %p131 = por %p129, %p130
      %p133 = scmp.ne.s32.totalorder %s116, %s132
      %p134 = scmp.eq.s32.totalorder %s19, 0
      %p135 = por %p133, %p134
      %p136 = scmp.le.s32.totalorder 1, %s13
      %p137 = scmp.lt.s32.totalorder %s13, 3
      %p138 = pnand %p136, %p137
      %p139 = pneg %p138
      // Predicated region
      $region9: #{tpu_custom_call.1} parent=5 // pred_check
        _
      $region10: #{tpu_custom_call.1} parent=5 // pred_check_branch
        %141 = sbr.rel (%p138) target = $region12
      $region11: #{tpu_custom_call.1} parent=5 // pred_region
        %s142 = ssub.s32 %s13, 1
        // Predicated region
        $region13: #{tpu_custom_call.1} parent=11 // pred_check
          %p143 = pneg %p60
        $region14: #{tpu_custom_call.1} parent=11 // pred_check_branch
          %145 = sbr.rel (%p143) target = $region16
        $region15: #{tpu_custom_call.1} parent=11 // pred_region
          _
        $region16: #{tpu_custom_call.1} parent=11 // pred_fallthru
          _
        // Predicated region
        $region17: #{tpu_custom_call.1} parent=11 // pred_check
          %p146 = pneg %p81
        $region18: #{tpu_custom_call.1} parent=11 // pred_check_branch
          %148 = sbr.rel (%p146) target = $region20
        $region19: #{tpu_custom_call.1} parent=11 // pred_region
          _
        $region20: #{tpu_custom_call.1} parent=11 // pred_fallthru
          _
        // Predicated region
        $region21: #{tpu_custom_call.1} parent=11 // pred_check
          %p149 = pneg %p102
        $region22: #{tpu_custom_call.1} parent=11 // pred_check_branch
          %151 = sbr.rel (%p149) target = $region24
        $region23: #{tpu_custom_call.1} parent=11 // pred_region
          _
        $region24: #{tpu_custom_call.1} parent=11 // pred_fallthru
          _
      $region12: #{tpu_custom_call.1} parent=5 // pred_fallthru
        _
      %p152 = scmp.lt.s32.totalorder %s13, 2
      // Predicated region
      $region25: #{tpu_custom_call.1} parent=5 // pred_check
        %p153 = pneg %p152
      $region26: #{tpu_custom_call.1} parent=5 // pred_check_branch
        %155 = sbr.rel (%p153) target = $region28
      $region27: #{tpu_custom_call.1} parent=5 // pred_region
        // Predicated region
        $region29: #{tpu_custom_call.1} parent=27 // pred_check
          %p156 = pneg %p33
        $region30: #{tpu_custom_call.1} parent=27 // pred_check_branch
          %158 = sbr.rel (%p156) target = $region32
        $region31: #{tpu_custom_call.1} parent=27 // pred_region
          %p159 = scmp.lt.s32.totalorder %s13, 1
          %s160 = scalar_select %p159, %s13, 1
          %s161 = smul.addr %s160, 4
          %s162 = scalar_lea.vmem %s0, %s161
        $region32: #{tpu_custom_call.1} parent=27 // pred_fallthru
          _
      $region28: #{tpu_custom_call.1} parent=5 // pred_fallthru
        _
      %p163 = scmp.le.s32.totalorder 1, %s13
      %p164 = scmp.lt.s32.totalorder %s13, 3
      %p165 = pnand %p163, %p164
      %p166 = pneg %p165
      // Predicated region
      $region33: #{tpu_custom_call.1} parent=5 // pred_check
        _
      $region34: #{tpu_custom_call.1} parent=5 // pred_check_branch
        %168 = sbr.rel (%p165) target = $region36
      $region35: #{tpu_custom_call.1} parent=5 // pred_region
        %s169 = ssub.s32 %s13, 1
        %p170 = scmp.lt.s32.totalorder %s18, 1
        %s171 = scalar_select %p170, %s18, 1
        %s172 = smul.addr %s171, 4
        %s173 = scalar_lea.vmem %s0, %s172
        %p174 = pneg %p39
        %p175 = pneg %p36
        %p176 = pneg %p60
        %p177 = pneg %p57
        %p178 = pneg %p81
        %p179 = pneg %p78
        %p180 = pneg %p102
        %p181 = pneg %p99
        %p182 = pneg %p128
        %p183 = pneg %p125
        %s184 = sand.u32 %s115, 1
        %s185 = scalar_lea.sflag [#allocation4], %s184
        %s186 = sand.u32 %s115, 1
        %s187 = smul.addr %s186, 8
        %s188 = scalar_lea.vmem [#allocation3], %s187
        %p189 = scmp.lt.s32.totalorder %s18, 1
        %s190 = scalar_select %p189, %s18, 1
        %s191 = smul.addr %s190, 4
        %s192 = scalar_lea.vmem %s0, %s191
        %v194 = vld [vmem:[%s192] sm:$0xf]
        %v195 = vld [vmem:[%s1] sm:$0xff]
        %v196 = vld [vmem:[%s1 + $0x8] sm:$0xff]
        %v197 = vld [vmem:[%s1 + $0x10] sm:$0xff]
        %v198 = vld [vmem:[%s1 + $0x18] sm:$0xff]
        %v203 = vunpack.c.l.b16 %v195
        %v204 = vunpack.c.h.b16 %v195
        %v205 = vunpack.c.l.b16 %v196
        %v206 = vunpack.c.h.b16 %v196
        %v207 = vunpack.c.l.b16 %v197
        %v208 = vunpack.c.h.b16 %v197
        %v209 = vunpack.c.l.b16 %v198
        %v210 = vunpack.c.h.b16 %v198
        %v211 = vpack.c.b16 %v205, %v203
        %v212 = vpack.c.b16 %v206, %v204
        %v213 = vpack.c.b16 %v209, %v207
        %v214 = vpack.c.b16 %v210, %v208
        %vm219 = vcmask 261120
        %v221 = vsel %vm219, %v194, 0
        %223 = vmatprep.subr.bf16.mxu0 0
        %224 = vmatpush1.bf16.msra.mxu0 0
        %225 = vmatprep.subr.bf16.mxu0 0
        %226 = vmatpush1.bf16.msra.mxu0 0
        %227 = vmatprep.subr.bf16.mxu0 0
        %228 = vmatpush1.bf16.msra.mxu0 0
        %229 = vmatprep.subr.bf16.mxu0 0
        %230 = vmatpush1.bf16.msra.mxu0 0
        %231 = vmatprep.subr.bf16.mxu0 0
        %232 = vmatpush1.bf16.msra.mxu0 0
        %233 = vmatprep.subr.bf16.mxu0 0
        %234 = vmatpush1.bf16.msra.mxu0 0
        %235 = vmatprep.subr.bf16.mxu0 %v214
        %236 = vmatpush1.bf16.msra.mxu0 %v213
        %237 = vmatprep.subr.bf16.mxu0 %v212
        %238 = vmatpush1.bf16.msra.mxu0 %v211
        %239 = vmatprep.subr.bf16.mxu0 0
        %240 = vmatpush2.bf16.msra.mxu0 0
        %241 = vmatprep.subr.bf16.mxu0 0
        %242 = vmatpush2.bf16.msra.mxu0 0
        %243 = vmatprep.subr.bf16.mxu0 0
        %244 = vmatpush2.bf16.msra.mxu0 0
        %245 = vmatprep.subr.bf16.mxu0 0
        %246 = vmatpush2.bf16.msra.mxu0 0
        %247 = vmatprep.subr.bf16.mxu0 0
        %248 = vmatpush2.bf16.msra.mxu0 0
        %249 = vmatprep.subr.bf16.mxu0 0
        %250 = vmatpush2.bf16.msra.mxu0 0
        %251 = vmatprep.subr.bf16.mxu0 0
        %252 = vmatpush2.bf16.msra.mxu0 0
        %253 = vmatprep.subr.bf16.mxu0 0
        %254 = vmatpush2.bf16.msra.mxu0 0
        %255 = vmatprep.mubr.bf16.mxu0 0
        %256 = vmatmul.mubr.bf16.gmra.mxu0 %v221
        %v257 = vpop.f32.mrf.mxu0
        %v258 = vadd.f32 0.0, %v257
        %v259 = vpop.f32.mrf.mxu0
        %v260 = vadd.f32 0.0, %v259
        %v261 = vpop.f32.mrf.mxu0
        %v262 = vpop.f32.mrf.mxu0
        %263 = vdwg.mxu0
        %v264 = vlaneseq
        %v265 = vand.u32 %v264, 127
        %v266 = vadd.s32 %v265, 128
        %vm267 = vcmp.lt.s32.totalorder %v265, 64
        %vm268 = vcmp.lt.s32.totalorder %v266, 64
        %v269 = vsel %vm267, 0.17677669, 1.0
        %v270 = vsel %vm268, 0.17677669, 1.0
        %v271 = vmul.f32 %v258, %v269
        %v272 = vmul.f32 %v260, %v270
        %v273 = vpack.c.bf16 %v271, %v271
        %v274 = vpack.c.bf16 %v272, %v272
        %v277 = vunpack.c.l.b16 %v273
        %v278 = vunpack.c.l.b16 %v274
        %v279 = vpack.c.b16 %v278, %v277
        %vm281 = vcmask 1043456
        %vm282 = vcmask 523268
        %vm283 = vmor %vm282, %vm281
        %284 = vst.msk [vmem:[#allocation2] sm:$0xff] %vm283, %v279
        %v285 = vld [vmem:[%s2] sm:$0xf]
        %v286 = vld [vmem:[%s2 + $0x4] sm:$0xf]
        %v287 = vld [vmem:[%s2 + $0x8] sm:$0xf]
        %v288 = vld [vmem:[%s2 + $0xc] sm:$0xf]
        %v289 = vld [vmem:[%s2 + $0x10] sm:$0xf]
        %v290 = vld [vmem:[%s2 + $0x14] sm:$0xf]
        %v291 = vld [vmem:[%s2 + $0x18] sm:$0xf]
        %v292 = vld [vmem:[%s2 + $0x1c] sm:$0xf]
        %v293 = vld [vmem:[%s3] sm:$0x1]
        %s294 = smul.u32 0, 2
        %s295 = smul.addr %s294, 4
        %s296 = scalar_lea.vmem [#allocation2], %s295
        %v297 = vld [vmem:[%s296] sm:$0xf]
        %v298 = vld [vmem:[%s296 + $0x4] sm:$0xf]
        %v300 = vunpack.c.l.b16 %v297
        %v301 = vpack.c.b16 %v300, %v300
        %302 = vrot.lane.b32.xlu0 %v301, 64
        %v303 = vpop.permute.xlu0 %302
        %vm304 = vcmask 130048
        %v306 = vsel %vm304, %v297, 0
        %v309 = vsel %vm304, %v303, 0
        %311 = vmatprep.subr.bf16.mxu0 0
        %312 = vmatpush1.bf16.xpose.msra.mxu0 0
        %313 = vmatprep.subr.bf16.mxu0 0
        %314 = vmatpush1.bf16.xpose.msra.mxu0 0
        %315 = vmatprep.subr.bf16.mxu0 0
        %316 = vmatpush1.bf16.xpose.msra.mxu0 0
        %317 = vmatprep.subr.bf16.mxu0 0
        %318 = vmatpush1.bf16.xpose.msra.mxu0 0
        %319 = vmatprep.subr.bf16.mxu0 0
        %320 = vmatpush1.bf16.xpose.msra.mxu0 0
        %321 = vmatprep.subr.bf16.mxu0 0
        %322 = vmatpush1.bf16.xpose.msra.mxu0 0
        %323 = vmatprep.subr.bf16.mxu0 0
        %324 = vmatpush1.bf16.xpose.msra.mxu0 0
        %325 = vmatprep.subr.bf16.mxu0 0
        %326 = vmatpush1.bf16.xpose.msra.mxu0 %v309
        %327 = vmatprep.subr.bf16.mxu0 0
        %328 = vmatpush2.bf16.xpose.msra.mxu0 0
        %329 = vmatprep.subr.bf16.mxu0 0
        %330 = vmatpush2.bf16.xpose.msra.mxu0 0
        %331 = vmatprep.subr.bf16.mxu0 0
        %332 = vmatpush2.bf16.xpose.msra.mxu0 0
        %333 = vmatprep.subr.bf16.mxu0 0
        %334 = vmatpush2.bf16.xpose.msra.mxu0 0
        %335 = vmatprep.subr.bf16.mxu0 0
        %336 = vmatpush2.bf16.xpose.msra.mxu0 0
        %337 = vmatprep.subr.bf16.mxu0 0
        %338 = vmatpush2.bf16.xpose.msra.mxu0 0
        %339 = vmatprep.subr.bf16.mxu0 0
        %340 = vmatpush2.bf16.xpose.msra.mxu0 0
        %341 = vmatprep.subr.bf16.mxu0 0
        %342 = vmatpush2.bf16.xpose.msra.mxu0 0
        %343 = vmatprep.mubr.bf16.mxu0 0
        %344 = vmatmul.mubr.bf16.gmra.mxu0 %v306
        %v345 = vpop.f32.mrf.mxu0
        %v346 = vadd.f32 0.0, %v345
        %v347 = vpop.f32.mrf.mxu0
        %v348 = vpop.f32.mrf.mxu0
        %v349 = vpop.f32.mrf.mxu0
        %350 = vdwg.mxu0
        %vm351 = vcmask 64512
        %v352 = vsel %vm351, %v346, -inf
        %353 = vmax.xlane.f32.xlu0 %v352
        %v354 = vpop.xlane.xlu0 %353
        %v355 = vsub.f32 %v346, %v354
        %v356 = vmul.f32 %v355, 1.442695
        %v357 = vpow.pop %v356
        %v358 = vsel %vm351, %v357, 0.0
        %359 = vadd.xlane.f32.xlu0 %v358
        %v360 = vpop.xlane.xlu0 %359
        %v361 = vpack.c.bf16 %v357, %v357
        %v363 = vsel %vm351, %v361, 0
        %v366 = vsel %vm281, %v298, 0
        %368 = vmatprep.subr.bf16.mxu0 0
        %369 = vmatpush1.bf16.msra.mxu0 0
        %370 = vmatprep.subr.bf16.mxu0 0
        %371 = vmatpush1.bf16.msra.mxu0 0
        %372 = vmatprep.subr.bf16.mxu0 0
        %373 = vmatpush1.bf16.msra.mxu0 0
        %374 = vmatprep.subr.bf16.mxu0 0
        %375 = vmatpush1.bf16.msra.mxu0 0
        %376 = vmatprep.subr.bf16.mxu0 0
        %377 = vmatpush1.bf16.msra.mxu0 0
        %378 = vmatprep.subr.bf16.mxu0 0
        %379 = vmatpush1.bf16.msra.mxu0 0
        %380 = vmatprep.subr.bf16.mxu0 0
        %381 = vmatpush1.bf16.msra.mxu0 0
        %382 = vmatprep.subr.bf16.mxu0 0
        %383 = vmatpush1.bf16.msra.mxu0 %v366
        %384 = vmatprep.subr.bf16.mxu0 0
        %385 = vmatpush2.bf16.msra.mxu0 0
        %386 = vmatprep.subr.bf16.mxu0 0
        %387 = vmatpush2.bf16.msra.mxu0 0
        %388 = vmatprep.subr.bf16.mxu0 0
        %389 = vmatpush2.bf16.msra.mxu0 0
        %390 = vmatprep.subr.bf16.mxu0 0
        %391 = vmatpush2.bf16.msra.mxu0 0
        %392 = vmatprep.subr.bf16.mxu0 0
        %393 = vmatpush2.bf16.msra.mxu0 0
        %394 = vmatprep.subr.bf16.mxu0 0
        %395 = vmatpush2.bf16.msra.mxu0 0
        %396 = vmatprep.subr.bf16.mxu0 0
        %397 = vmatpush2.bf16.msra.mxu0 0
        %398 = vmatprep.subr.bf16.mxu0 0
        %399 = vmatpush2.bf16.msra.mxu0 0
        %400 = vmatprep.mubr.bf16.mxu0 0
        %401 = vmatmul.mubr.bf16.gmra.mxu0 %v363
        %v402 = vpop.f32.mrf.mxu0
        %v403 = vadd.f32 0.0, %v402
        %v404 = vpop.f32.mrf.mxu0
        %v405 = vpop.f32.mrf.mxu0
        %v406 = vpop.f32.mrf.mxu0
        %407 = vdwg.mxu0
        %v408 = vrcp.pop %v360
        %v409 = vmul.f32 %v403, %v408
        %v410 = vpack.c.bf16 %v409, %v409
        %411 = vrot.lane.b32.xlu0 %v301, 112
        %v412 = vpop.permute.xlu0 %411
        %413 = vrot.lane.b32.xlu0 %v301, 48
        %v414 = vpop.permute.xlu0 %413
        %v416 = vsel %vm304, %v412, 0
        %v419 = vsel %vm304, %v414, 0
        %421 = vmatprep.subr.bf16.mxu0 0
        %422 = vmatpush1.bf16.xpose.msra.mxu0 0
        %423 = vmatprep.subr.bf16.mxu0 0
        %424 = vmatpush1.bf16.xpose.msra.mxu0 0
        %425 = vmatprep.subr.bf16.mxu0 0
        %426 = vmatpush1.bf16.xpose.msra.mxu0 0
        %427 = vmatprep.subr.bf16.mxu0 0
        %428 = vmatpush1.bf16.xpose.msra.mxu0 0
        %429 = vmatprep.subr.bf16.mxu0 0
        %430 = vmatpush1.bf16.xpose.msra.mxu0 0
        %431 = vmatprep.subr.bf16.mxu0 0
        %432 = vmatpush1.bf16.xpose.msra.mxu0 0
        %433 = vmatprep.subr.bf16.mxu0 0
        %434 = vmatpush1.bf16.xpose.msra.mxu0 0
        %435 = vmatprep.subr.bf16.mxu0 0
        %436 = vmatpush1.bf16.xpose.msra.mxu0 %v419
        %437 = vmatprep.subr.bf16.mxu0 0
        %438 = vmatpush2.bf16.xpose.msra.mxu0 0
        %439 = vmatprep.subr.bf16.mxu0 0
        %440 = vmatpush2.bf16.xpose.msra.mxu0 0
        %441 = vmatprep.subr.bf16.mxu0 0
        %442 = vmatpush2.bf16.xpose.msra.mxu0 0
        %443 = vmatprep.subr.bf16.mxu0 0
        %444 = vmatpush2.bf16.xpose.msra.mxu0 0
        %445 = vmatprep.subr.bf16.mxu0 0
        %446 = vmatpush2.bf16.xpose.msra.mxu0 0
        %447 = vmatprep.subr.bf16.mxu0 0
        %448 = vmatpush2.bf16.xpose.msra.mxu0 0
        %449 = vmatprep.subr.bf16.mxu0 0
        %450 = vmatpush2.bf16.xpose.msra.mxu0 0
        %451 = vmatprep.subr.bf16.mxu0 0
        %452 = vmatpush2.bf16.xpose.msra.mxu0 0
        %453 = vmatprep.mubr.bf16.mxu0 0
        %454 = vmatmul.mubr.bf16.gmra.mxu0 %v416
        %v455 = vpop.f32.mrf.mxu0
        %v456 = vadd.f32 0.0, %v455
        %v457 = vpop.f32.mrf.mxu0
        %v458 = vpop.f32.mrf.mxu0
        %v459 = vpop.f32.mrf.mxu0
        %460 = vdwg.mxu0
        %v461 = vsel %vm351, %v456, -inf
        %462 = vmax.xlane.f32.xlu0 %v461
        %v463 = vpop.xlane.xlu0 %462
        %v464 = vsub.f32 %v456, %v463
        %v465 = vmul.f32 %v464, 1.442695
        %v466 = vpow.pop %v465
        %v467 = vsel %vm351, %v466, 0.0
        %468 = vadd.xlane.f32.xlu0 %v467
        %v469 = vpop.xlane.xlu0 %468
        %v470 = vpack.c.bf16 %v466, %v466
        %v472 = vunpack.c.l.b16 %v298
        %v473 = vpack.c.b16 %v472, %v472
        %474 = vrot.lane.b32.xlu0 %v473, 112
        %v475 = vpop.permute.xlu0 %474
        %v477 = vsel %vm351, %v470, 0
        %v480 = vsel %vm281, %v475, 0
        %482 = vmatprep.subr.bf16.mxu0 0
        %483 = vmatpush1.bf16.msra.mxu0 0
        %484 = vmatprep.subr.bf16.mxu0 0
        %485 = vmatpush1.bf16.msra.mxu0 0
        %486 = vmatprep.subr.bf16.mxu0 0
        %487 = vmatpush1.bf16.msra.mxu0 0
        %488 = vmatprep.subr.bf16.mxu0 0
        %489 = vmatpush1.bf16.msra.mxu0 0
        %490 = vmatprep.subr.bf16.mxu0 0
        %491 = vmatpush1.bf16.msra.mxu0 0
        %492 = vmatprep.subr.bf16.mxu0 0
        %493 = vmatpush1.bf16.msra.mxu0 0
        %494 = vmatprep.subr.bf16.mxu0 0
        %495 = vmatpush1.bf16.msra.mxu0 0
        %496 = vmatprep.subr.bf16.mxu0 0
        %497 = vmatpush1.bf16.msra.mxu0 %v480
        %498 = vmatprep.subr.bf16.mxu0 0
        %499 = vmatpush2.bf16.msra.mxu0 0
        %500 = vmatprep.subr.bf16.mxu0 0
        %501 = vmatpush2.bf16.msra.mxu0 0
        %502 = vmatprep.subr.bf16.mxu0 0
        %503 = vmatpush2.bf16.msra.mxu0 0
        %504 = vmatprep.subr.bf16.mxu0 0
        %505 = vmatpush2.bf16.msra.mxu0 0
        %506 = vmatprep.subr.bf16.mxu0 0
        %507 = vmatpush2.bf16.msra.mxu0 0
        %508 = vmatprep.subr.bf16.mxu0 0
        %509 = vmatpush2.bf16.msra.mxu0 0
        %510 = vmatprep.subr.bf16.mxu0 0
        %511 = vmatpush2.bf16.msra.mxu0 0
        %512 = vmatprep.subr.bf16.mxu0 0
        %513 = vmatpush2.bf16.msra.mxu0 0
        %514 = vmatprep.mubr.bf16.mxu0 0
        %515 = vmatmul.mubr.bf16.gmra.mxu0 %v477
        %v516 = vpop.f32.mrf.mxu0
        %v517 = vadd.f32 0.0, %v516
        %v518 = vpop.f32.mrf.mxu0
        %v519 = vpop.f32.mrf.mxu0
        %v520 = vpop.f32.mrf.mxu0
        %521 = vdwg.mxu0
        %v522 = vrcp.pop %v469
        %v523 = vmul.f32 %v517, %v522
        %v524 = vpack.c.bf16 %v523, %v523
        %v527 = vunpack.c.l.b16 %v287
        %v528 = vunpack.c.l.b16 %v288
        %v529 = vpack.c.b16 %v528, %v527
        %v532 = vsel %vm304, %v524, 0
        %534 = vmatprep.subr.bf16.mxu0 0
        %535 = vmatpush1.bf16.msra.mxu0 0
        %536 = vmatprep.subr.bf16.mxu0 0
        %537 = vmatpush1.bf16.msra.mxu0 0
        %538 = vmatprep.subr.bf16.mxu0 0
        %539 = vmatpush1.bf16.msra.mxu0 0
        %540 = vmatprep.subr.bf16.mxu0 0
        %541 = vmatpush1.bf16.msra.mxu0 0
        %542 = vmatprep.subr.bf16.mxu0 0
        %543 = vmatpush1.bf16.msra.mxu0 0
        %544 = vmatprep.subr.bf16.mxu0 0
        %545 = vmatpush1.bf16.msra.mxu0 0
        %546 = vmatprep.subr.bf16.mxu0 0
        %547 = vmatpush1.bf16.msra.mxu0 0
        %548 = vmatprep.subr.bf16.mxu0 0
        %549 = vmatpush1.bf16.msra.mxu0 %v529
        %550 = vmatprep.subr.bf16.mxu0 0
        %551 = vmatpush2.bf16.msra.mxu0 0
        %552 = vmatprep.subr.bf16.mxu0 0
        %553 = vmatpush2.bf16.msra.mxu0 0
        %554 = vmatprep.subr.bf16.mxu0 0
        %555 = vmatpush2.bf16.msra.mxu0 0
        %556 = vmatprep.subr.bf16.mxu0 0
        %557 = vmatpush2.bf16.msra.mxu0 0
        %558 = vmatprep.subr.bf16.mxu0 0
        %559 = vmatpush2.bf16.msra.mxu0 0
        %560 = vmatprep.subr.bf16.mxu0 0
        %561 = vmatpush2.bf16.msra.mxu0 0
        %562 = vmatprep.subr.bf16.mxu0 0
        %563 = vmatpush2.bf16.msra.mxu0 0
        %564 = vmatprep.subr.bf16.mxu0 0
        %565 = vmatpush2.bf16.msra.mxu0 0
        %566 = vmatprep.mubr.bf16.mxu0 0
        %567 = vmatmul.mubr.bf16.gmra.mxu0 %v532
        %v568 = vpop.f32.mrf.mxu0
        %v569 = vadd.f32 0.0, %v568
        %v570 = vpop.f32.mrf.mxu0
        %v571 = vpop.f32.mrf.mxu0
        %v572 = vpop.f32.mrf.mxu0
        %573 = vdwg.mxu0
        %v576 = vunpack.c.l.b16 %v285
        %v577 = vunpack.c.l.b16 %v286
        %v578 = vpack.c.b16 %v577, %v576
        %v581 = vsel %vm304, %v410, 0
        %583 = vmatprep.subr.bf16.mxu0 0
        %584 = vmatpush1.bf16.msra.mxu0 0
        %585 = vmatprep.subr.bf16.mxu0 0
        %586 = vmatpush1.bf16.msra.mxu0 0
        %587 = vmatprep.subr.bf16.mxu0 0
        %588 = vmatpush1.bf16.msra.mxu0 0
        %589 = vmatprep.subr.bf16.mxu0 0
        %590 = vmatpush1.bf16.msra.mxu0 0
        %591 = vmatprep.subr.bf16.mxu0 0
        %592 = vmatpush1.bf16.msra.mxu0 0
        %593 = vmatprep.subr.bf16.mxu0 0
        %594 = vmatpush1.bf16.msra.mxu0 0
        %595 = vmatprep.subr.bf16.mxu0 0
        %596 = vmatpush1.bf16.msra.mxu0 0
        %597 = vmatprep.subr.bf16.mxu0 0
        %598 = vmatpush1.bf16.msra.mxu0 %v578
        %599 = vmatprep.subr.bf16.mxu0 0
        %600 = vmatpush2.bf16.msra.mxu0 0
        %601 = vmatprep.subr.bf16.mxu0 0
        %602 = vmatpush2.bf16.msra.mxu0 0
        %603 = vmatprep.subr.bf16.mxu0 0
        %604 = vmatpush2.bf16.msra.mxu0 0
        %605 = vmatprep.subr.bf16.mxu0 0
        %606 = vmatpush2.bf16.msra.mxu0 0
        %607 = vmatprep.subr.bf16.mxu0 0
        %608 = vmatpush2.bf16.msra.mxu0 0
        %609 = vmatprep.subr.bf16.mxu0 0
        %610 = vmatpush2.bf16.msra.mxu0 0
        %611 = vmatprep.subr.bf16.mxu0 0
        %612 = vmatpush2.bf16.msra.mxu0 0
        %613 = vmatprep.subr.bf16.mxu0 0
        %614 = vmatpush2.bf16.msra.mxu0 0
        %615 = vmatprep.mubr.bf16.mxu0 0
        %616 = vmatmul.mubr.bf16.gmra.mxu0 %v581
        %v617 = vpop.f32.mrf.mxu0
        %v618 = vadd.f32 %v569, %v617
        %v619 = vpop.f32.mrf.mxu0
        %v620 = vpop.f32.mrf.mxu0
        %v621 = vpop.f32.mrf.mxu0
        %622 = vdwg.mxu0
        %623 = vrot.lane.b32.xlu0 %v301, 96
        %v624 = vpop.permute.xlu0 %623
        %625 = vrot.lane.b32.xlu0 %v301, 32
        %v626 = vpop.permute.xlu0 %625
        %v628 = vsel %vm304, %v624, 0
        %v631 = vsel %vm304, %v626, 0
        %633 = vmatprep.subr.bf16.mxu0 0
        %634 = vmatpush1.bf16.xpose.msra.mxu0 0
        %635 = vmatprep.subr.bf16.mxu0 0
        %636 = vmatpush1.bf16.xpose.msra.mxu0 0
        %637 = vmatprep.subr.bf16.mxu0 0
        %638 = vmatpush1.bf16.xpose.msra.mxu0 0
        %639 = vmatprep.subr.bf16.mxu0 0
        %640 = vmatpush1.bf16.xpose.msra.mxu0 0
        %641 = vmatprep.subr.bf16.mxu0 0
        %642 = vmatpush1.bf16.xpose.msra.mxu0 0
        %643 = vmatprep.subr.bf16.mxu0 0
        %644 = vmatpush1.bf16.xpose.msra.mxu0 0
        %645 = vmatprep.subr.bf16.mxu0 0
        %646 = vmatpush1.bf16.xpose.msra.mxu0 0
        %647 = vmatprep.subr.bf16.mxu0 0
        %648 = vmatpush1.bf16.xpose.msra.mxu0 %v631
        %649 = vmatprep.subr.bf16.mxu0 0
        %650 = vmatpush2.bf16.xpose.msra.mxu0 0
        %651 = vmatprep.subr.bf16.mxu0 0
        %652 = vmatpush2.bf16.xpose.msra.mxu0 0
        %653 = vmatprep.subr.bf16.mxu0 0
        %654 = vmatpush2.bf16.xpose.msra.mxu0 0
        %655 = vmatprep.subr.bf16.mxu0 0
        %656 = vmatpush2.bf16.xpose.msra.mxu0 0
        %657 = vmatprep.subr.bf16.mxu0 0
        %658 = vmatpush2.bf16.xpose.msra.mxu0 0
        %659 = vmatprep.subr.bf16.mxu0 0
        %660 = vmatpush2.bf16.xpose.msra.mxu0 0
        %661 = vmatprep.subr.bf16.mxu0 0
        %662 = vmatpush2.bf16.xpose.msra.mxu0 0
        %663 = vmatprep.subr.bf16.mxu0 0
        %664 = vmatpush2.bf16.xpose.msra.mxu0 0
        %665 = vmatprep.mubr.bf16.mxu0 0
        %666 = vmatmul.mubr.bf16.gmra.mxu0 %v628
        %v667 = vpop.f32.mrf.mxu0
        %v668 = vadd.f32 0.0, %v667
        %v669 = vpop.f32.mrf.mxu0
        %v670 = vpop.f32.mrf.mxu0
        %v671 = vpop.f32.mrf.mxu0
        %672 = vdwg.mxu0
        %v673 = vsel %vm351, %v668, -inf
        %674 = vmax.xlane.f32.xlu0 %v673
        %v675 = vpop.xlane.xlu0 %674
        %v676 = vsub.f32 %v668, %v675
        %v677 = vmul.f32 %v676, 1.442695
        %v678 = vpow.pop %v677
        %v679 = vsel %vm351, %v678, 0.0
        %680 = vadd.xlane.f32.xlu0 %v679
        %v681 = vpop.xlane.xlu0 %680
        %v682 = vpack.c.bf16 %v678, %v678
        %683 = vrot.lane.b32.xlu0 %v473, 96
        %v684 = vpop.permute.xlu0 %683
        %v686 = vsel %vm351, %v682, 0
        %v689 = vsel %vm281, %v684, 0
        %691 = vmatprep.subr.bf16.mxu0 0
        %692 = vmatpush1.bf16.msra.mxu0 0
        %693 = vmatprep.subr.bf16.mxu0 0
        %694 = vmatpush1.bf16.msra.mxu0 0
        %695 = vmatprep.subr.bf16.mxu0 0
        %696 = vmatpush1.bf16.msra.mxu0 0
        %697 = vmatprep.subr.bf16.mxu0 0
        %698 = vmatpush1.bf16.msra.mxu0 0
        %699 = vmatprep.subr.bf16.mxu0 0
        %700 = vmatpush1.bf16.msra.mxu0 0
        %701 = vmatprep.subr.bf16.mxu0 0
        %702 = vmatpush1.bf16.msra.mxu0 0
        %703 = vmatprep.subr.bf16.mxu0 0
        %704 = vmatpush1.bf16.msra.mxu0 0
        %705 = vmatprep.subr.bf16.mxu0 0
        %706 = vmatpush1.bf16.msra.mxu0 %v689
        %707 = vmatprep.subr.bf16.mxu0 0
        %708 = vmatpush2.bf16.msra.mxu0 0
        %709 = vmatprep.subr.bf16.mxu0 0
        %710 = vmatpush2.bf16.msra.mxu0 0
        %711 = vmatprep.subr.bf16.mxu0 0
        %712 = vmatpush2.bf16.msra.mxu0 0
        %713 = vmatprep.subr.bf16.mxu0 0
        %714 = vmatpush2.bf16.msra.mxu0 0
        %715 = vmatprep.subr.bf16.mxu0 0
        %716 = vmatpush2.bf16.msra.mxu0 0
        %717 = vmatprep.subr.bf16.mxu0 0
        %718 = vmatpush2.bf16.msra.mxu0 0
        %719 = vmatprep.subr.bf16.mxu0 0
        %720 = vmatpush2.bf16.msra.mxu0 0
        %721 = vmatprep.subr.bf16.mxu0 0
        %722 = vmatpush2.bf16.msra.mxu0 0
        %723 = vmatprep.mubr.bf16.mxu0 0
        %724 = vmatmul.mubr.bf16.gmra.mxu0 %v686
        %v725 = vpop.f32.mrf.mxu0
        %v726 = vadd.f32 0.0, %v725
        %v727 = vpop.f32.mrf.mxu0
        %v728 = vpop.f32.mrf.mxu0
        %v729 = vpop.f32.mrf.mxu0
        %730 = vdwg.mxu0
        %v731 = vrcp.pop %v681
        %v732 = vmul.f32 %v726, %v731
        %v733 = vpack.c.bf16 %v732, %v732
        %v736 = vunpack.c.l.b16 %v289
        %v737 = vunpack.c.l.b16 %v290
        %v738 = vpack.c.b16 %v737, %v736
        %v741 = vsel %vm304, %v733, 0
        %743 = vmatprep.subr.bf16.mxu0 0
        %744 = vmatpush1.bf16.msra.mxu0 0
        %745 = vmatprep.subr.bf16.mxu0 0
        %746 = vmatpush1.bf16.msra.mxu0 0
        %747 = vmatprep.subr.bf16.mxu0 0
        %748 = vmatpush1.bf16.msra.mxu0 0
        %749 = vmatprep.subr.bf16.mxu0 0
        %750 = vmatpush1.bf16.msra.mxu0 0
        %751 = vmatprep.subr.bf16.mxu0 0
        %752 = vmatpush1.bf16.msra.mxu0 0
        %753 = vmatprep.subr.bf16.mxu0 0
        %754 = vmatpush1.bf16.msra.mxu0 0
        %755 = vmatprep.subr.bf16.mxu0 0
        %756 = vmatpush1.bf16.msra.mxu0 0
        %757 = vmatprep.subr.bf16.mxu0 0
        %758 = vmatpush1.bf16.msra.mxu0 %v738
        %759 = vmatprep.subr.bf16.mxu0 0
        %760 = vmatpush2.bf16.msra.mxu0 0
        %761 = vmatprep.subr.bf16.mxu0 0
        %762 = vmatpush2.bf16.msra.mxu0 0
        %763 = vmatprep.subr.bf16.mxu0 0
        %764 = vmatpush2.bf16.msra.mxu0 0
        %765 = vmatprep.subr.bf16.mxu0 0
        %766 = vmatpush2.bf16.msra.mxu0 0
        %767 = vmatprep.subr.bf16.mxu0 0
        %768 = vmatpush2.bf16.msra.mxu0 0
        %769 = vmatprep.subr.bf16.mxu0 0
        %770 = vmatpush2.bf16.msra.mxu0 0
        %771 = vmatprep.subr.bf16.mxu0 0
        %772 = vmatpush2.bf16.msra.mxu0 0
        %773 = vmatprep.subr.bf16.mxu0 0
        %774 = vmatpush2.bf16.msra.mxu0 0
        %775 = vmatprep.mubr.bf16.mxu0 0
        %776 = vmatmul.mubr.bf16.gmra.mxu0 %v741
        %v777 = vpop.f32.mrf.mxu0
        %v778 = vadd.f32 0.0, %v777
        %v779 = vpop.f32.mrf.mxu0
        %v780 = vpop.f32.mrf.mxu0
        %v781 = vpop.f32.mrf.mxu0
        %782 = vdwg.mxu0
        %v783 = vadd.f32 %v618, %v778
        %784 = vrot.lane.b32.xlu0 %v301, 80
        %v785 = vpop.permute.xlu0 %784
        %786 = vrot.lane.b32.xlu0 %v301, 16
        %v787 = vpop.permute.xlu0 %786
        %v789 = vsel %vm304, %v785, 0
        %v792 = vsel %vm304, %v787, 0
        %794 = vmatprep.subr.bf16.mxu0 0
        %795 = vmatpush1.bf16.xpose.msra.mxu0 0
        %796 = vmatprep.subr.bf16.mxu0 0
        %797 = vmatpush1.bf16.xpose.msra.mxu0 0
        %798 = vmatprep.subr.bf16.mxu0 0
        %799 = vmatpush1.bf16.xpose.msra.mxu0 0
        %800 = vmatprep.subr.bf16.mxu0 0
        %801 = vmatpush1.bf16.xpose.msra.mxu0 0
        %802 = vmatprep.subr.bf16.mxu0 0
        %803 = vmatpush1.bf16.xpose.msra.mxu0 0
        %804 = vmatprep.subr.bf16.mxu0 0
        %805 = vmatpush1.bf16.xpose.msra.mxu0 0
        %806 = vmatprep.subr.bf16.mxu0 0
        %807 = vmatpush1.bf16.xpose.msra.mxu0 0
        %808 = vmatprep.subr.bf16.mxu0 0
        %809 = vmatpush1.bf16.xpose.msra.mxu0 %v792
        %810 = vmatprep.subr.bf16.mxu0 0
        %811 = vmatpush2.bf16.xpose.msra.mxu0 0
        %812 = vmatprep.subr.bf16.mxu0 0
        %813 = vmatpush2.bf16.xpose.msra.mxu0 0
        %814 = vmatprep.subr.bf16.mxu0 0
        %815 = vmatpush2.bf16.xpose.msra.mxu0 0
        %816 = vmatprep.subr.bf16.mxu0 0
        %817 = vmatpush2.bf16.xpose.msra.mxu0 0
        %818 = vmatprep.subr.bf16.mxu0 0
        %819 = vmatpush2.bf16.xpose.msra.mxu0 0
        %820 = vmatprep.subr.bf16.mxu0 0
        %821 = vmatpush2.bf16.xpose.msra.mxu0 0
        %822 = vmatprep.subr.bf16.mxu0 0
        %823 = vmatpush2.bf16.xpose.msra.mxu0 0
        %824 = vmatprep.subr.bf16.mxu0 0
        %825 = vmatpush2.bf16.xpose.msra.mxu0 0
        %826 = vmatprep.mubr.bf16.mxu0 0
        %827 = vmatmul.mubr.bf16.gmra.mxu0 %v789
        %v828 = vpop.f32.mrf.mxu0
        %v829 = vadd.f32 0.0, %v828
        %v830 = vpop.f32.mrf.mxu0
        %v831 = vpop.f32.mrf.mxu0
        %v832 = vpop.f32.mrf.mxu0
        %833 = vdwg.mxu0
        %v834 = vsel %vm351, %v829, -inf
        %835 = vmax.xlane.f32.xlu0 %v834
        %v836 = vpop.xlane.xlu0 %835
        %v837 = vsub.f32 %v829, %v836
        %v838 = vmul.f32 %v837, 1.442695
        %v839 = vpow.pop %v838
        %v840 = vsel %vm351, %v839, 0.0
        %841 = vadd.xlane.f32.xlu0 %v840
        %v842 = vpop.xlane.xlu0 %841
        %v843 = vpack.c.bf16 %v839, %v839
        %844 = vrot.lane.b32.xlu0 %v473, 80
        %v845 = vpop.permute.xlu0 %844
        %v847 = vsel %vm351, %v843, 0
        %v850 = vsel %vm281, %v845, 0
        %852 = vmatprep.subr.bf16.mxu0 0
        %853 = vmatpush1.bf16.msra.mxu0 0
        %854 = vmatprep.subr.bf16.mxu0 0
        %855 = vmatpush1.bf16.msra.mxu0 0
        %856 = vmatprep.subr.bf16.mxu0 0
        %857 = vmatpush1.bf16.msra.mxu0 0
        %858 = vmatprep.subr.bf16.mxu0 0
        %859 = vmatpush1.bf16.msra.mxu0 0
        %860 = vmatprep.subr.bf16.mxu0 0
        %861 = vmatpush1.bf16.msra.mxu0 0
        %862 = vmatprep.subr.bf16.mxu0 0
        %863 = vmatpush1.bf16.msra.mxu0 0
        %864 = vmatprep.subr.bf16.mxu0 0
        %865 = vmatpush1.bf16.msra.mxu0 0
        %866 = vmatprep.subr.bf16.mxu0 0
        %867 = vmatpush1.bf16.msra.mxu0 %v850
        %868 = vmatprep.subr.bf16.mxu0 0
        %869 = vmatpush2.bf16.msra.mxu0 0
        %870 = vmatprep.subr.bf16.mxu0 0
        %871 = vmatpush2.bf16.msra.mxu0 0
        %872 = vmatprep.subr.bf16.mxu0 0
        %873 = vmatpush2.bf16.msra.mxu0 0
        %874 = vmatprep.subr.bf16.mxu0 0
        %875 = vmatpush2.bf16.msra.mxu0 0
        %876 = vmatprep.subr.bf16.mxu0 0
        %877 = vmatpush2.bf16.msra.mxu0 0
        %878 = vmatprep.subr.bf16.mxu0 0
        %879 = vmatpush2.bf16.msra.mxu0 0
        %880 = vmatprep.subr.bf16.mxu0 0
        %881 = vmatpush2.bf16.msra.mxu0 0
        %882 = vmatprep.subr.bf16.mxu0 0
        %883 = vmatpush2.bf16.msra.mxu0 0
        %884 = vmatprep.mubr.bf16.mxu0 0
        %885 = vmatmul.mubr.bf16.gmra.mxu0 %v847
        %v886 = vpop.f32.mrf.mxu0
        %v887 = vadd.f32 0.0, %v886
        %v888 = vpop.f32.mrf.mxu0
        %v889 = vpop.f32.mrf.mxu0
        %v890 = vpop.f32.mrf.mxu0
        %891 = vdwg.mxu0
        %v892 = vrcp.pop %v842
        %v893 = vmul.f32 %v887, %v892
        %v894 = vpack.c.bf16 %v893, %v893
        %v897 = vunpack.c.l.b16 %v291
        %v898 = vunpack.c.l.b16 %v292
        %v899 = vpack.c.b16 %v898, %v897
        %v902 = vsel %vm304, %v894, 0
        %904 = vmatprep.subr.bf16.mxu0 0
        %905 = vmatpush1.bf16.msra.mxu0 0
        %906 = vmatprep.subr.bf16.mxu0 0
        %907 = vmatpush1.bf16.msra.mxu0 0
        %908 = vmatprep.subr.bf16.mxu0 0
        %909 = vmatpush1.bf16.msra.mxu0 0
        %910 = vmatprep.subr.bf16.mxu0 0
        %911 = vmatpush1.bf16.msra.mxu0 0
        %912 = vmatprep.subr.bf16.mxu0 0
        %913 = vmatpush1.bf16.msra.mxu0 0
        %914 = vmatprep.subr.bf16.mxu0 0
        %915 = vmatpush1.bf16.msra.mxu0 0
        %916 = vmatprep.subr.bf16.mxu0 0
        %917 = vmatpush1.bf16.msra.mxu0 0
        %918 = vmatprep.subr.bf16.mxu0 0
        %919 = vmatpush1.bf16.msra.mxu0 %v899
        %920 = vmatprep.subr.bf16.mxu0 0
        %921 = vmatpush2.bf16.msra.mxu0 0
        %922 = vmatprep.subr.bf16.mxu0 0
        %923 = vmatpush2.bf16.msra.mxu0 0
        %924 = vmatprep.subr.bf16.mxu0 0
        %925 = vmatpush2.bf16.msra.mxu0 0
        %926 = vmatprep.subr.bf16.mxu0 0
        %927 = vmatpush2.bf16.msra.mxu0 0
        %928 = vmatprep.subr.bf16.mxu0 0
        %929 = vmatpush2.bf16.msra.mxu0 0
        %930 = vmatprep.subr.bf16.mxu0 0
        %931 = vmatpush2.bf16.msra.mxu0 0
        %932 = vmatprep.subr.bf16.mxu0 0
        %933 = vmatpush2.bf16.msra.mxu0 0
        %934 = vmatprep.subr.bf16.mxu0 0
        %935 = vmatpush2.bf16.msra.mxu0 0
        %936 = vmatprep.mubr.bf16.mxu0 0
        %937 = vmatmul.mubr.bf16.gmra.mxu0 %v902
        %v938 = vpop.f32.mrf.mxu0
        %v939 = vadd.f32 0.0, %v938
        %v940 = vpop.f32.mrf.mxu0
        %v941 = vpop.f32.mrf.mxu0
        %v942 = vpop.f32.mrf.mxu0
        %943 = vdwg.mxu0
        %v944 = vadd.f32 %v783, %v939
        %v946 = vlaneseq
        %v947 = vshrl.u32 %v946, 7
        %v948 = vsub.s32 0, %v947
        %v949 = vrot.slane %v293, %v948
        %v951 = vadd.f32 %v944, %v949
        %952 = vst.msk [vmem:[%s188] sm:$0xff] %vm219, %v951
        %s953 = sand.u32 %s115, 1
        %s954 = scalar_lea.sflag [#allocation4], %s953
        %s955 = sand.u32 %s115, 1
        %s956 = smul.addr %s955, 8
        %s957 = scalar_lea.vmem [#allocation3], %s956
        // Predicated region
        $region37: #{tpu_custom_call.1} parent=35 // pred_check
          %p958 = pneg %p125
        $region38: #{tpu_custom_call.1} parent=35 // pred_check_branch
          %960 = sbr.rel (%p958) target = $region40
        $region39: #{tpu_custom_call.1} parent=35 // pred_region
          %s962 = ssub.s32 128, 128
          %963 = vsyncadd %s954, %s962
          %s964 = smul.addr %s18, 128
          %s965 = scalar_lea.hbm %s4, %s964
          %s967 = sshll.u32 %s957, 4
          %s968 = int_to_ptr.vmem [resolvable:$true] %s967
          %970 = dma.vmem_to_hbm [thread:$0]  %s968, 128, %s965, %s954
        $region40: #{tpu_custom_call.1} parent=35 // pred_fallthru
          _
      $region36: #{tpu_custom_call.1} parent=5 // pred_fallthru
        _
      %p971 = scmp.le.s32.totalorder 2, %s13
      // Predicated region
      $region41: #{tpu_custom_call.1} parent=5 // pred_check
        %p972 = pneg %p971
      $region42: #{tpu_custom_call.1} parent=5 // pred_check_branch
        %974 = sbr.rel (%p972) target = $region44
      $region43: #{tpu_custom_call.1} parent=5 // pred_region
        %s975 = ssub.s32 %s13, 2
        // Predicated region
        $region45: #{tpu_custom_call.1} parent=43 // pred_check
          %p976 = pneg %p131
        $region46: #{tpu_custom_call.1} parent=43 // pred_check_branch
          %978 = sbr.rel (%p976) target = $region48
        $region47: #{tpu_custom_call.1} parent=43 // pred_region
          %s979 = sand.u32 %s116, 1
          %s980 = scalar_lea.sflag [#allocation4], %s979
          %s981 = sand.u32 %s116, 1
          %s982 = smul.addr %s981, 8
          %s983 = scalar_lea.vmem [#allocation3], %s982
          %984 = dma.done %s980, 128
        $region48: #{tpu_custom_call.1} parent=43 // pred_fallthru
          _
      $region44: #{tpu_custom_call.1} parent=5 // pred_fallthru
        _
    $region6: #{tpu_custom_call.1} parent=1 // loop_footer
      %s17 = sadd.s32 1, %s13
    $region7: #{tpu_custom_call.1} parent=1 // loop_footer_branch
      %12 = sbr.rel target = $region3
    $region8: #{tpu_custom_call.1} parent=1 // loop_exit
      _
    %985 = vsyncpa [#allocation4], 1
    %s986 = scalar_lea.sflag [#allocation4], 1
    %987 = vsyncpa %s986, 1

</llo_original>
